<compile_context>
chip_gen: v6e
topology: v6e:2x2x1
jax: 0.10.0
libtpu: 0.0.40
codegen_flags: <defaults>
</compile_context>

<pallas_src>
import jax
import jax.numpy as jnp
import numpy as np
from jax.experimental import pallas as pl
from jax.experimental.pallas import tpu as pltpu


def bahdanau_kernel(annot_ref, pq_ref, wa_ref, v_ref, out_ref):
    # Per-grid-step views:
    #   annot_ref : (Bb, Tt, Da)  input dtype     pq_ref : (Bb, H, 1) f32
    #   wa_ref    : (H, Da)       compute dtype    v_ref : (H, 1)     f32
    #   out_ref   : (Bb, Tt)
    a = annot_ref[...].astype(wa_ref.dtype)                 # cast to matmul dtype (bf16)
    wa = wa_ref[...]
    bb = a.shape[0]

    # Batched contraction over Da (minor dim of both operands -> canonical TPU
    # 'bqd,bkd->bqk' pattern), f32 MXU accumulation.  Result keeps H on sublanes and
    # Tt on lanes.
    wab = jnp.broadcast_to(wa[None], (bb,) + wa.shape)      # (Bb, H, Da)
    pa = jnp.einsum("bhd,btd->bht", wab, a,
                    preferred_element_type=jnp.float32)     # (Bb, H, Tt) f32

    # pq already contains the query projection plus BOTH Linear biases; it broadcasts
    # along the Tt lane axis.
    s = jnp.tanh(pa + pq_ref[...])                          # (Bb, H, Tt) f32

    # v projection == v-weighted reduction over H (sublanes); (Bb, Tt) keeps Tt on
    # lanes -> dense, unmasked output store with no relayout.
    align = jnp.sum(s * v_ref[...][None], axis=1)           # (Bb, Tt) f32
    out_ref[...] = align.astype(out_ref.dtype)


def _round_up(x, m):
    return ((x + m - 1) // m) * m


def bahdanau_attention(annots, query, params, *, compute_dtype=jnp.bfloat16,
                       block_b=32, block_t=512):
    """annots: (B, T, Da); query: (B, Dq) or (B, 1, Dq) -> alignment (B, T)."""
    if query.ndim == 2:
        query = query[:, None, :]
    B, T, Da = annots.shape
    H = params["query_w"].shape[0]
    out_dtype = annots.dtype    # matches the PyTorch module's output dtype

    # ---- hoisted query projection, both Linear biases folded in (computed once, f32) --
    pq_all = (
        jnp.einsum("bod,hd->bh", query.astype(jnp.float32),
                   params["query_w"].astype(jnp.float32))
        + params["query_b"].astype(jnp.float32)
        + params["annot_b"].astype(jnp.float32)
    )                                                        # (B, H)

    wa = params["annot_w"].astype(compute_dtype)             # (H, Da)  PyTorch layout
    v_col = params["v_w"].reshape(H, 1).astype(jnp.float32)  # (H, 1)   (v.weight is (1, H))

    # ---- generation-aware VMEM budget ------------------------------------------------
    try:
        phys_vmem = int(pltpu.get_tpu_info().vmem_capacity_bytes)
    except Exception:
        phys_vmem = 64 * 1024 * 1024                         # v7x-safe fallback
    vmem_limit = int(min(max(phys_vmem // 2, 32 * 1024 * 1024), 96 * 1024 * 1024))
    budget = vmem_limit // 2                                  # headroom for spills/pipeline

    isz_a = jnp.dtype(annots.dtype).itemsize
    isz_c = jnp.dtype(compute_dtype).itemsize
    isz_o = jnp.dtype(out_dtype).itemsize
    da_pad = _round_up(Da, 128)                               # lane padding of annot tile
    h_sub = _round_up(H, 8)

    def step_bytes(bb, tt):
        bb8 = _round_up(bb, 8)
        # double-buffered I/O tiles (lane / sublane padding included)
        io = 2 * (bb * tt * da_pad * isz_a                    # annots tile
                  + bb * h_sub * 128 * 4                      # pq tile (trailing 1 -> 128 lanes)
                  + h_sub * da_pad * isz_c                    # Wa (resident)
                  + h_sub * 128 * 4                           # v  (resident)
                  + bb8 * tt * isz_o)                         # out tile
        # in-kernel temporaries (cast, broadcast Wa, f32 pa/tanh values)
        tmp = (bb * tt * da_pad * isz_c
               + bb * h_sub * da_pad * isz_c
               + 2 * bb * h_sub * tt * 4)
        return io + tmp

    # ---- tile sizing ------------------------------------------------------------------
    t128 = _round_up(T, 128)
    tt = min(_round_up(block_t, 128), t128)
    bb = min(_round_up(block_b, 8), _round_up(B, 8))
    if bb >= B:
        bb = B                                                # full-dim batch block is legal

    def shrink_t(t):
        return max(128, ((t // 2) // 128) * 128)

    def shrink_b(b):
        return max(8, ((b // 2) // 8) * 8)

    while step_bytes(bb, tt) > budget:
        if tt > 128 and (tt >= 4 * bb or bb <= 8):
            tt = shrink_t(tt)
        elif bb > 8:
            bb = shrink_b(bb)
        elif tt > 128:
            tt = shrink_t(tt)
        else:
            break                                             # minimum tile; rely on vmem_limit

    # v7x megacore: prefer >= 2 grid steps so both TensorCores get work.
    if (_round_up(B, bb) // bb) * (_round_up(T, tt) // tt) < 2:
        if tt > 128:
            tt = shrink_t(tt)
        elif bb > 8:
            bb = shrink_b(bb)
        # toy shapes (B small, T <= 128) stay single-step -- nothing to split.

    b_pad = _round_up(B, bb)
    t_pad = _round_up(T, tt)

    # ---- pad up to the tile grid (zeros; padded rows/cols are sliced off below) --------
    annots_p = annots
    if t_pad != T or b_pad != B:
        annots_p = jnp.pad(annots, ((0, b_pad - B), (0, t_pad - T), (0, 0)))
    pq_p = jnp.pad(pq_all, ((0, b_pad - B), (0, 0))) if b_pad != B else pq_all
    pq3 = pq_p[:, :, None]                                    # (B_pad, H, 1)

    grid = (b_pad // bb, t_pad // tt)

    out = pl.pallas_call(
        bahdanau_kernel,
        out_shape=jax.ShapeDtypeStruct((b_pad, t_pad), out_dtype),
        grid_spec=pltpu.PrefetchScalarGridSpec(
            num_scalar_prefetch=0,
            grid=grid,
            in_specs=[
                pl.BlockSpec((bb, tt, Da), lambda i, j: (i, j, 0)),   # annots tile
                pl.BlockSpec((bb, H, 1), lambda i, j: (i, 0, 0)),     # pq tile (batch only)
                pl.BlockSpec((H, Da), lambda i, j: (0, 0)),           # resident Wa
                pl.BlockSpec((H, 1), lambda i, j: (0, 0)),            # resident v
            ],
            out_specs=pl.BlockSpec((bb, tt), lambda i, j: (i, j)),
        ),
        compiler_params=pltpu.CompilerParams(
            dimension_semantics=("parallel", "parallel"),   # v7x shards both axes over 2 TCs
            vmem_limit_bytes=vmem_limit,
        ),
    )(annots_p, pq3, wa, v_col)

    return out[:B, :T]


def reference_np(annots, query, params):
    """Float64 numpy reference of the PyTorch module (device-precision independent)."""
    a = np.asarray(annots, np.float64)
    q = np.asarray(query, np.float64)
    if q.ndim == 2:
        q = q[:, None, :]
    wq = np.asarray(params["query_w"], np.float64)
    bq = np.asarray(params["query_b"], np.float64)
    wa = np.asarray(params["annot_w"], np.float64)
    ba = np.asarray(params["annot_b"], np.float64)
    vw = np.asarray(params["v_w"], np.float64)
    pq = np.einsum("bqd,hd->bqh", q, wq) + bq
    pa = np.einsum("btd,hd->bth", a, wa) + ba
    align = np.einsum("bth,oh->bto", np.tanh(pq + pa), vw)
    return align[..., 0]


if __name__ == "__main__":
    B, T = 2, 8
    annot_dim, query_dim, hidden_dim = 4, 4, 32

    key = jax.random.PRNGKey(0)
    ks = jax.random.split(key, 7)
    params = {
        # PyTorch nn.Linear weight layout: (out_features, in_features)
        "query_w": jax.random.normal(ks[0], (hidden_dim, query_dim), jnp.float32) * 0.1,
        "query_b": jax.random.normal(ks[1], (hidden_dim,), jnp.float32) * 0.1,
        "annot_w": jax.random.normal(ks[2], (hidden_dim, annot_dim), jnp.float32) * 0.1,
        "annot_b": jax.random.normal(ks[3], (hidden_dim,), jnp.float32) * 0.1,
        "v_w":     jax.random.normal(ks[4], (1, hidden_dim), jnp.float32) * 0.1,
    }
    annots = jax.random.normal(ks[5], (B, T, annot_dim), jnp.float32)
    query = jax.random.normal(ks[6], (B, query_dim), jnp.float32)

    ref = reference_np(annots, query, params)

    # Full-precision configuration (f32 matmul inputs) -> tight check vs f64 reference.
    out_f32 = jax.block_until_ready(
        bahdanau_attention(annots, query, params, compute_dtype=jnp.float32))
    assert out_f32.shape == (B, T), out_f32.shape
    assert np.allclose(np.asarray(out_f32), ref, atol=5e-3, rtol=5e-3), (out_f32, ref)

    # Default perf configuration (bf16 MXU inputs, f32 accumulate) -> loose check.
    out_bf16 = jax.block_until_ready(bahdanau_attention(annots, query, params))
    assert out_bf16.shape == (B, T), out_bf16.shape
    assert np.allclose(np.asarray(out_bf16), ref, atol=3e-2, rtol=3e-2), (out_bf16, ref)

    print("KERNEL_OK")
</pallas_src>

<mosaic_0001>
module attributes {stable_mosaic.version = 11 : i64} {
  func.func @bahdanau_kernel(%arg0: i32, %arg1: i32, %arg2: memref<2x128x4xf32, #tpu.memory_space<vmem>>, %arg3: memref<2x32x1xf32, #tpu.memory_space<vmem>>, %arg4: memref<32x4xf32, #tpu.memory_space<vmem>>, %arg5: memref<32x1xf32, #tpu.memory_space<vmem>>, %arg6: memref<2x128xf32, #tpu.memory_space<vmem>>) attributes {dimension_semantics = [#tpu.dimension_semantics<parallel>, #tpu.dimension_semantics<parallel>], iteration_bounds = array<i64: 1, 1>, scalar_prefetch = 0 : i64, scratch_operands = 0 : i64, tpu.core_type = #tpu.core_type<tc>, window_params = [{transform_indices = @transform_0, window_bounds = array<i64: 2, 128, 4>}, {transform_indices = @transform_1, window_bounds = array<i64: 2, 32, 1>}, {pipeline_mode = #tpu.pipeline_mode<synchronous>, transform_indices = @transform_2, window_bounds = array<i64: 32, 4>}, {pipeline_mode = #tpu.pipeline_mode<synchronous>, transform_indices = @transform_3, window_bounds = array<i64: 32, 1>}, {transform_indices = @transform_4, window_bounds = array<i64: 2, 128>}]} {
    %c0 = arith.constant 0 : index
    %c0_0 = arith.constant 0 : index
    %c0_1 = arith.constant 0 : index
    %0 = vector.load %arg2[%c0, %c0_0, %c0_1] : memref<2x128x4xf32, #tpu.memory_space<vmem>>, vector<2x128x4xf32>
    %c0_2 = arith.constant 0 : index
    %c0_3 = arith.constant 0 : index
    %1 = vector.load %arg4[%c0_2, %c0_3] : memref<32x4xf32, #tpu.memory_space<vmem>>, vector<32x4xf32>
    %2 = vector.shape_cast %1 : vector<32x4xf32> to vector<1x32x4xf32>
    %3 = vector.shape_cast %2 : vector<1x32x4xf32> to vector<1x32x4xf32>
    %4 = vector.broadcast %3 : vector<1x32x4xf32> to vector<2x32x4xf32>
    "tpu.trace_start"() <{level = 10 : i32, message = "bhd,btd->bht"}> : () -> ()
    %cst = arith.constant dense<0.000000e+00> : vector<2x32x128xf32>
    %5 = tpu.matmul %4, %0, %cst {dimension_numbers = #tpu.dot_dimension_numbers<[2], [2], [1], [1], [0, 0, 0, 1, 1, 1], [0], [0]>} : vector<2x32x4xf32>, vector<2x128x4xf32>, vector<2x32x128xf32> -> vector<2x32x128xf32>
    "tpu.trace_stop"() : () -> ()
    %c0_4 = arith.constant 0 : index
    %c0_5 = arith.constant 0 : index
    %c0_6 = arith.constant 0 : index
    %6 = vector.load %arg3[%c0_4, %c0_5, %c0_6] : memref<2x32x1xf32, #tpu.memory_space<vmem>>, vector<2x32x1xf32>
    %7 = vector.broadcast %6 : vector<2x32x1xf32> to vector<2x32x128xf32>
    %8 = arith.addf %5, %7 : vector<2x32x128xf32>
    %9 = math.tanh %8 : vector<2x32x128xf32>
    %c0_7 = arith.constant 0 : index
    %c0_8 = arith.constant 0 : index
    %10 = vector.load %arg5[%c0_7, %c0_8] : memref<32x1xf32, #tpu.memory_space<vmem>>, vector<32x1xf32>
    %11 = vector.shape_cast %10 : vector<32x1xf32> to vector<1x32x1xf32>
    %12 = vector.broadcast %11 : vector<1x32x1xf32> to vector<2x32x128xf32>
    %13 = arith.mulf %9, %12 : vector<2x32x128xf32>
    %cst_9 = arith.constant dense<0.000000e+00> : vector<2x128xf32>
    %14 = vector.multi_reduction <add>, %13, %cst_9 [1] : vector<2x32x128xf32> to vector<2x128xf32>
    %c0_10 = arith.constant 0 : index
    %c0_11 = arith.constant 0 : index
    %15 = vector.load %arg6[%c0_10, %c0_11] : memref<2x128xf32, #tpu.memory_space<vmem>>, vector<2x128xf32>
    tpu.vector_store %arg6[%c0_10, %c0_11], %14 {strides = array<i32>} : memref<2x128xf32, #tpu.memory_space<vmem>>, vector<2x128xf32>,
    return
  }
  func.func @transform_0(%arg0: i32, %arg1: i32) -> (i32, i32, i32) {
    %c0_i32 = arith.constant 0 : i32
    %c0_i32_0 = arith.constant 0 : i32
    return %arg0, %arg1, %c0_i32 : i32, i32, i32
  }
  func.func @transform_1(%arg0: i32, %arg1: i32) -> (i32, i32, i32) {
    %c0_i32 = arith.constant 0 : i32
    %c0_i32_0 = arith.constant 0 : i32
    %c0_i32_1 = arith.constant 0 : i32
    return %arg0, %c0_i32, %c0_i32_0 : i32, i32, i32
  }
  func.func @transform_2(%arg0: i32, %arg1: i32) -> (i32, i32) {
    %c0_i32 = arith.constant 0 : i32
    %c0_i32_0 = arith.constant 0 : i32
    %c0_i32_1 = arith.constant 0 : i32
    return %c0_i32, %c0_i32_0 : i32, i32
  }
  func.func @transform_3(%arg0: i32, %arg1: i32) -> (i32, i32) {
    %c0_i32 = arith.constant 0 : i32
    %c0_i32_0 = arith.constant 0 : i32
    %c0_i32_1 = arith.constant 0 : i32
    return %c0_i32, %c0_i32_0 : i32, i32
  }
  func.func @transform_4(%arg0: i32, %arg1: i32) -> (i32, i32) {
    %c0_i32 = arith.constant 0 : i32
    return %arg0, %arg1 : i32, i32
  }
}

</mosaic_0001>

<llo_original>
// kernel: tpu_custom_call.1
$region0: #{tpu_custom_call.1}
  #allocation0 [shape = 'u32[]', space=smem, size = 0x4, offset = 0x4, fixed_abs, tag = 'smem constant byte address 0x4 - core index']
  #allocation1 [shape = 'u32[144,128]{1,0:T(1,128)}', space=vmem, size = 0x12000, scoped, tag = 'internal scratch']
  %s0 = inlined_call_operand.vmem [shape: f32[2,128,4], index: 0, kind: input, shape index: {}]
  %s1 = inlined_call_operand.vmem [shape: f32[2,32,1], index: 1, kind: input, shape index: {}]
  %s2 = inlined_call_operand.vmem [shape: f32[32,4], index: 2, kind: input, shape index: {}]
  %s3 = inlined_call_operand.vmem [shape: f32[32,1], index: 3, kind: input, shape index: {}]
  %s4 = inlined_call_operand.hbm [shape: f32[2,128], index: 4, kind: output, shape index: {}]
  %s5 = sld [smem:[#allocation0]]
  $region26: #{tpu_custom_call.1} parent=0
    _
  %s7 = ssub.s32 1, %s5
  %s8 = scalar_select 0, %s7, %s5
  $region1: #{tpu_custom_call.1} parent=0
    #allocation2 [shape = 'u8[1024]{0}', space=vmem, size = 0x400, scoped, tag = 'output window, operand 0, single buffered']
    #allocation3 [shape = 's32[1]{0}', space=sflag, size = 0x4, scoped, tag = 'scoped memory for tpu_custom_call.1']
    %9 = vsyncpa [#allocation3], 0
    // Predicated region
    $region2: #{tpu_custom_call.1} parent=1 // pred_check
      _
    $region3: #{tpu_custom_call.1} parent=1 // pred_check_branch
      %11 = sbr.rel (0) target = $region5
    $region4: #{tpu_custom_call.1} parent=1 // pred_region
      _
    $region5: #{tpu_custom_call.1} parent=1 // pred_fallthru
      _
    // Predicated region
    $region6: #{tpu_custom_call.1} parent=1 // pred_check
      _
    $region7: #{tpu_custom_call.1} parent=1 // pred_check_branch
      %13 = sbr.rel (0) target = $region9
    $region8: #{tpu_custom_call.1} parent=1 // pred_region
      _
    $region9: #{tpu_custom_call.1} parent=1 // pred_fallthru
      _
    // Predicated region
    $region10: #{tpu_custom_call.1} parent=1 // pred_check
      _
    $region11: #{tpu_custom_call.1} parent=1 // pred_check_branch
      %15 = sbr.rel (0) target = $region13
    $region12: #{tpu_custom_call.1} parent=1 // pred_region
      _
    $region13: #{tpu_custom_call.1} parent=1 // pred_fallthru
      _
    // Predicated region
    $region14: #{tpu_custom_call.1} parent=1 // pred_check
      _
    $region15: #{tpu_custom_call.1} parent=1 // pred_check_branch
      %17 = sbr.rel (0) target = $region17
    $region16: #{tpu_custom_call.1} parent=1 // pred_region
      _
    $region17: #{tpu_custom_call.1} parent=1 // pred_fallthru
      _
    %v18 = vld [vmem:[%s0] sm:$0xff]
    %v19 = vld [vmem:[%s0 + $0x8] sm:$0xff]
    %v20 = vld [vmem:[%s0 + $0x10] sm:$0xff]
    %v21 = vld [vmem:[%s0 + $0x18] sm:$0xff]
    %v22 = vld [vmem:[%s0 + $0x20] sm:$0xff]
    %v23 = vld [vmem:[%s0 + $0x28] sm:$0xff]
    %v24 = vld [vmem:[%s0 + $0x30] sm:$0xff]
    %v25 = vld [vmem:[%s0 + $0x38] sm:$0xff]
    %v26 = vld [vmem:[%s0 + $0x40] sm:$0xff]
    %v27 = vld [vmem:[%s0 + $0x48] sm:$0xff]
    %v28 = vld [vmem:[%s0 + $0x50] sm:$0xff]
    %v29 = vld [vmem:[%s0 + $0x58] sm:$0xff]
    %v30 = vld [vmem:[%s0 + $0x60] sm:$0xff]
    %v31 = vld [vmem:[%s0 + $0x68] sm:$0xff]
    %v32 = vld [vmem:[%s0 + $0x70] sm:$0xff]
    %v33 = vld [vmem:[%s0 + $0x78] sm:$0xff]
    %v34 = vld [vmem:[%s0 + $0x80] sm:$0xff]
    %v35 = vld [vmem:[%s0 + $0x88] sm:$0xff]
    %v36 = vld [vmem:[%s0 + $0x90] sm:$0xff]
    %v37 = vld [vmem:[%s0 + $0x98] sm:$0xff]
    %v38 = vld [vmem:[%s0 + $0xa0] sm:$0xff]
    %v39 = vld [vmem:[%s0 + $0xa8] sm:$0xff]
    %v40 = vld [vmem:[%s0 + $0xb0] sm:$0xff]
    %v41 = vld [vmem:[%s0 + $0xb8] sm:$0xff]
    %v42 = vld [vmem:[%s0 + $0xc0] sm:$0xff]
    %v43 = vld [vmem:[%s0 + $0xc8] sm:$0xff]
    %v44 = vld [vmem:[%s0 + $0xd0] sm:$0xff]
    %v45 = vld [vmem:[%s0 + $0xd8] sm:$0xff]
    %v46 = vld [vmem:[%s0 + $0xe0] sm:$0xff]
    %v47 = vld [vmem:[%s0 + $0xe8] sm:$0xff]
    %v48 = vld [vmem:[%s0 + $0xf0] sm:$0xff]
    %v49 = vld [vmem:[%s0 + $0xf8] sm:$0xff]
    %v50 = vld [vmem:[%s2] sm:$0xff]
    %v51 = vld [vmem:[%s2 + $0x8] sm:$0xff]
    %v52 = vld [vmem:[%s2 + $0x10] sm:$0xff]
    %v53 = vld [vmem:[%s2 + $0x18] sm:$0xff]
    %v54 = vld [vmem:[%s1] sm:$0xff]
    %v55 = vld [vmem:[%s1 + $0x8] sm:$0xff]
    %v56 = vld [vmem:[%s1 + $0x10] sm:$0xff]
    %v57 = vld [vmem:[%s1 + $0x18] sm:$0xff]
    %v58 = vld [vmem:[%s1 + $0x20] sm:$0xff]
    %v59 = vld [vmem:[%s1 + $0x28] sm:$0xff]
    %v60 = vld [vmem:[%s1 + $0x30] sm:$0xff]
    %v61 = vld [vmem:[%s1 + $0x38] sm:$0xff]
    %63 = vset.pattern.permute.xlu0 0
    %64 = vperm.xlu0 %63, %v54
    %v65 = vpop.permute.xlu0 %64
    %68 = vset.pattern.permute.xlu0 0
    %69 = vperm.xlu0 %68, %v55
    %v70 = vpop.permute.xlu0 %69
    %73 = vset.pattern.permute.xlu0 0
    %74 = vperm.xlu0 %73, %v56
    %v75 = vpop.permute.xlu0 %74
    %78 = vset.pattern.permute.xlu0 0
    %79 = vperm.xlu0 %78, %v57
    %v80 = vpop.permute.xlu0 %79
    %83 = vset.pattern.permute.xlu0 0
    %84 = vperm.xlu0 %83, %v58
    %v85 = vpop.permute.xlu0 %84
    %88 = vset.pattern.permute.xlu0 0
    %89 = vperm.xlu0 %88, %v59
    %v90 = vpop.permute.xlu0 %89
    %93 = vset.pattern.permute.xlu0 0
    %94 = vperm.xlu0 %93, %v60
    %v95 = vpop.permute.xlu0 %94
    %98 = vset.pattern.permute.xlu0 0
    %99 = vperm.xlu0 %98, %v61
    %v100 = vpop.permute.xlu0 %99
    %vm102 = vcmask 31744
    %v104 = vsel %vm102, %v50, 0
    %v107 = vsel %vm102, %v51, 0
    %v110 = vsel %vm102, %v52, 0
    %v113 = vsel %vm102, %v53, 0
    %v116 = vsel %vm102, %v18, 0
    %v119 = vsel %vm102, %v19, 0
    %v122 = vsel %vm102, %v20, 0
    %v125 = vsel %vm102, %v21, 0
    %v128 = vsel %vm102, %v22, 0
    %v131 = vsel %vm102, %v23, 0
    %v134 = vsel %vm102, %v24, 0
    %v137 = vsel %vm102, %v25, 0
    %v140 = vsel %vm102, %v26, 0
    %v143 = vsel %vm102, %v27, 0
    %v146 = vsel %vm102, %v28, 0
    %v149 = vsel %vm102, %v29, 0
    %v152 = vsel %vm102, %v30, 0
    %v155 = vsel %vm102, %v31, 0
    %v158 = vsel %vm102, %v32, 0
    %v161 = vsel %vm102, %v33, 0
    %163 = vmatprep.subr.mxu0 0.0
    %164 = vmatpush1.xpose.msra.mxu0 %v161
    %165 = vmatprep.subr.mxu0 0.0
    %166 = vmatpush1.xpose.msra.mxu0 %v158
    %167 = vmatprep.subr.mxu0 0.0
    %168 = vmatpush1.xpose.msra.mxu0 %v155
    %169 = vmatprep.subr.mxu0 0.0
    %170 = vmatpush1.xpose.msra.mxu0 %v152
    %171 = vmatprep.subr.mxu0 0.0
    %172 = vmatpush1.xpose.msra.mxu0 %v149
    %173 = vmatprep.subr.mxu0 0.0
    %174 = vmatpush1.xpose.msra.mxu0 %v146
    %175 = vmatprep.subr.mxu0 0.0
    %176 = vmatpush1.xpose.msra.mxu0 %v143
    %177 = vmatprep.subr.mxu0 0.0
    %178 = vmatpush1.xpose.msra.mxu0 %v140
    %179 = vmatprep.subr.mxu0 0.0
    %180 = vmatpush1.xpose.msra.mxu0 %v137
    %181 = vmatprep.subr.mxu0 0.0
    %182 = vmatpush1.xpose.msra.mxu0 %v134
    %183 = vmatprep.subr.mxu0 0.0
    %184 = vmatpush1.xpose.msra.mxu0 %v131
    %185 = vmatprep.subr.mxu0 0.0
    %186 = vmatpush1.xpose.msra.mxu0 %v128
    %187 = vmatprep.subr.mxu0 0.0
    %188 = vmatpush1.xpose.msra.mxu0 %v125
    %189 = vmatprep.subr.mxu0 0.0
    %190 = vmatpush1.xpose.msra.mxu0 %v122
    %191 = vmatprep.subr.mxu0 0.0
    %192 = vmatpush1.xpose.msra.mxu0 %v119
    %193 = vmatprep.subr.mxu0 0.0
    %194 = vmatpush1.xpose.msra.mxu0 %v116
    %195 = vmatprep.subr.mxu0 0.0
    %196 = vmatpush2.xpose.msra.mxu0 0.0
    %197 = vmatprep.subr.mxu0 0.0
    %198 = vmatpush2.xpose.msra.mxu0 0.0
    %199 = vmatprep.subr.mxu0 0.0
    %200 = vmatpush2.xpose.msra.mxu0 0.0
    %201 = vmatprep.subr.mxu0 0.0
    %202 = vmatpush2.xpose.msra.mxu0 0.0
    %203 = vmatprep.subr.mxu0 0.0
    %204 = vmatpush2.xpose.msra.mxu0 0.0
    %205 = vmatprep.subr.mxu0 0.0
    %206 = vmatpush2.xpose.msra.mxu0 0.0
    %207 = vmatprep.subr.mxu0 0.0
    %208 = vmatpush2.xpose.msra.mxu0 0.0
    %209 = vmatprep.subr.mxu0 0.0
    %210 = vmatpush2.xpose.msra.mxu0 0.0
    %211 = vmatprep.subr.mxu0 0.0
    %212 = vmatpush2.xpose.msra.mxu0 0.0
    %213 = vmatprep.subr.mxu0 0.0
    %214 = vmatpush2.xpose.msra.mxu0 0.0
    %215 = vmatprep.subr.mxu0 0.0
    %216 = vmatpush2.xpose.msra.mxu0 0.0
    %217 = vmatprep.subr.mxu0 0.0
    %218 = vmatpush2.xpose.msra.mxu0 0.0
    %219 = vmatprep.subr.mxu0 0.0
    %220 = vmatpush2.xpose.msra.mxu0 0.0
    %221 = vmatprep.subr.mxu0 0.0
    %222 = vmatpush2.xpose.msra.mxu0 0.0
    %223 = vmatprep.subr.mxu0 0.0
    %224 = vmatpush2.xpose.msra.mxu0 0.0
    %225 = vmatprep.subr.mxu0 0.0
    %226 = vmatpush2.xpose.msra.mxu0 0.0
    %227 = vmatprep.mubr.f32.mxu0 0.0
    %228 = vmatmul.mubr.f32.gmra.mxu0 %v104
    %v229 = vpop.f32.mrf.mxu0
    %v230 = vadd.f32 %v65, %v229
    %v231 = vpop.f32.mrf.mxu0
    %232 = vmatprep.mubr.f32.mxu0 0.0
    %233 = vmatmul.mubr.f32.gmra.mxu0 %v107
    %v234 = vpop.f32.mrf.mxu0
    %v235 = vadd.f32 %v70, %v234
    %v236 = vpop.f32.mrf.mxu0
    %237 = vmatprep.mubr.f32.mxu0 0.0
    %238 = vmatmul.mubr.f32.gmra.mxu0 %v110
    %v239 = vpop.f32.mrf.mxu0
    %v240 = vadd.f32 %v75, %v239
    %v241 = vpop.f32.mrf.mxu0
    %242 = vmatprep.mubr.f32.mxu0 0.0
    %243 = vmatmul.mubr.f32.gmra.mxu0 %v113
    %v244 = vpop.f32.mrf.mxu0
    %v245 = vadd.f32 %v80, %v244
    %v246 = vpop.f32.mrf.mxu0
    %247 = vdwg.mxu0
    %v249 = vsel %vm102, %v34, 0
    %v252 = vsel %vm102, %v35, 0
    %v255 = vsel %vm102, %v36, 0
    %v258 = vsel %vm102, %v37, 0
    %v261 = vsel %vm102, %v38, 0
    %v264 = vsel %vm102, %v39, 0
    %v267 = vsel %vm102, %v40, 0
    %v270 = vsel %vm102, %v41, 0
    %v273 = vsel %vm102, %v42, 0
    %v276 = vsel %vm102, %v43, 0
    %v279 = vsel %vm102, %v44, 0
    %v282 = vsel %vm102, %v45, 0
    %v285 = vsel %vm102, %v46, 0
    %v288 = vsel %vm102, %v47, 0
    %v291 = vsel %vm102, %v48, 0
    %v294 = vsel %vm102, %v49, 0
    %296 = vmatprep.subr.mxu0 0.0
    %297 = vmatpush1.xpose.msra.mxu0 %v294
    %298 = vmatprep.subr.mxu0 0.0
    %299 = vmatpush1.xpose.msra.mxu0 %v291
    %300 = vmatprep.subr.mxu0 0.0
    %301 = vmatpush1.xpose.msra.mxu0 %v288
    %302 = vmatprep.subr.mxu0 0.0
    %303 = vmatpush1.xpose.msra.mxu0 %v285
    %304 = vmatprep.subr.mxu0 0.0
    %305 = vmatpush1.xpose.msra.mxu0 %v282
    %306 = vmatprep.subr.mxu0 0.0
    %307 = vmatpush1.xpose.msra.mxu0 %v279
    %308 = vmatprep.subr.mxu0 0.0
    %309 = vmatpush1.xpose.msra.mxu0 %v276
    %310 = vmatprep.subr.mxu0 0.0
    %311 = vmatpush1.xpose.msra.mxu0 %v273
    %312 = vmatprep.subr.mxu0 0.0
    %313 = vmatpush1.xpose.msra.mxu0 %v270
    %314 = vmatprep.subr.mxu0 0.0
    %315 = vmatpush1.xpose.msra.mxu0 %v267
    %316 = vmatprep.subr.mxu0 0.0
    %317 = vmatpush1.xpose.msra.mxu0 %v264
    %318 = vmatprep.subr.mxu0 0.0
    %319 = vmatpush1.xpose.msra.mxu0 %v261
    %320 = vmatprep.subr.mxu0 0.0
    %321 = vmatpush1.xpose.msra.mxu0 %v258
    %322 = vmatprep.subr.mxu0 0.0
    %323 = vmatpush1.xpose.msra.mxu0 %v255
    %324 = vmatprep.subr.mxu0 0.0
    %325 = vmatpush1.xpose.msra.mxu0 %v252
    %326 = vmatprep.subr.mxu0 0.0
    %327 = vmatpush1.xpose.msra.mxu0 %v249
    %328 = vmatprep.subr.mxu0 0.0
    %329 = vmatpush2.xpose.msra.mxu0 0.0
    %330 = vmatprep.subr.mxu0 0.0
    %331 = vmatpush2.xpose.msra.mxu0 0.0
    %332 = vmatprep.subr.mxu0 0.0
    %333 = vmatpush2.xpose.msra.mxu0 0.0
    %334 = vmatprep.subr.mxu0 0.0
    %335 = vmatpush2.xpose.msra.mxu0 0.0
    %336 = vmatprep.subr.mxu0 0.0
    %337 = vmatpush2.xpose.msra.mxu0 0.0
    %338 = vmatprep.subr.mxu0 0.0
    %339 = vmatpush2.xpose.msra.mxu0 0.0
    %340 = vmatprep.subr.mxu0 0.0
    %341 = vmatpush2.xpose.msra.mxu0 0.0
    %342 = vmatprep.subr.mxu0 0.0
    %343 = vmatpush2.xpose.msra.mxu0 0.0
    %344 = vmatprep.subr.mxu0 0.0
    %345 = vmatpush2.xpose.msra.mxu0 0.0
    %346 = vmatprep.subr.mxu0 0.0
    %347 = vmatpush2.xpose.msra.mxu0 0.0
    %348 = vmatprep.subr.mxu0 0.0
    %349 = vmatpush2.xpose.msra.mxu0 0.0
    %350 = vmatprep.subr.mxu0 0.0
    %351 = vmatpush2.xpose.msra.mxu0 0.0
    %352 = vmatprep.subr.mxu0 0.0
    %353 = vmatpush2.xpose.msra.mxu0 0.0
    %354 = vmatprep.subr.mxu0 0.0
    %355 = vmatpush2.xpose.msra.mxu0 0.0
    %356 = vmatprep.subr.mxu0 0.0
    %357 = vmatpush2.xpose.msra.mxu0 0.0
    %358 = vmatprep.subr.mxu0 0.0
    %359 = vmatpush2.xpose.msra.mxu0 0.0
    %360 = vmatprep.mubr.f32.mxu0 0.0
    %361 = vmatmul.mubr.f32.gmra.mxu0 %v104
    %v362 = vpop.f32.mrf.mxu0
    %v363 = vadd.f32 %v85, %v362
    %v364 = vpop.f32.mrf.mxu0
    %365 = vmatprep.mubr.f32.mxu0 0.0
    %366 = vmatmul.mubr.f32.gmra.mxu0 %v107
    %v367 = vpop.f32.mrf.mxu0
    %v368 = vadd.f32 %v90, %v367
    %v369 = vpop.f32.mrf.mxu0
    %370 = vmatprep.mubr.f32.mxu0 0.0
    %371 = vmatmul.mubr.f32.gmra.mxu0 %v110
    %v372 = vpop.f32.mrf.mxu0
    %v373 = vadd.f32 %v95, %v372
    %v374 = vpop.f32.mrf.mxu0
    %375 = vmatprep.mubr.f32.mxu0 0.0
    %376 = vmatmul.mubr.f32.gmra.mxu0 %v113
    %v377 = vpop.f32.mrf.mxu0
    %v378 = vadd.f32 %v100, %v377
    %v379 = vpop.f32.mrf.mxu0
    %380 = vdwg.mxu0
    %v381 = vtanh.pop %v230
    %v382 = vtanh.pop %v235
    %v383 = vtanh.pop %v240
    %v384 = vtanh.pop %v245
    %v385 = vtanh.pop %v363
    %v386 = vtanh.pop %v368
    %v387 = vtanh.pop %v373
    %v388 = vtanh.pop %v378
    %v389 = vld [vmem:[%s3] sm:$0xff]
    %v390 = vld [vmem:[%s3 + $0x8] sm:$0xff]
    %v391 = vld [vmem:[%s3 + $0x10] sm:$0xff]
    %v392 = vld [vmem:[%s3 + $0x18] sm:$0xff]
    %394 = vset.pattern.permute.xlu0 0
    %395 = vperm.xlu0 %394, %v389
    %v396 = vpop.permute.xlu0 %395
    %399 = vset.pattern.permute.xlu0 0
    %400 = vperm.xlu0 %399, %v390
    %v401 = vpop.permute.xlu0 %400
    %404 = vset.pattern.permute.xlu0 0
    %405 = vperm.xlu0 %404, %v391
    %v406 = vpop.permute.xlu0 %405
    %409 = vset.pattern.permute.xlu0 0
    %410 = vperm.xlu0 %409, %v392
    %v411 = vpop.permute.xlu0 %410
    %v413 = vmul.f32 %v381, %v396
    %v414 = vmul.f32 %v382, %v401
    %v415 = vmul.f32 %v383, %v406
    %v416 = vmul.f32 %v384, %v411
    %v417 = vmul.f32 %v385, %v396
    %v418 = vmul.f32 %v386, %v401
    %v419 = vmul.f32 %v387, %v406
    %v420 = vmul.f32 %v388, %v411
    %v421 = vadd.f32 %v413, %v414
    %v422 = vadd.f32 %v421, %v415
    %v423 = vadd.f32 %v422, %v416
    %v424 = vrot.slane %v423, 4
    %v425 = vadd.f32 %v423, %v424
    %v426 = vrot.slane %v425, 2
    %v427 = vadd.f32 %v425, %v426
    %v428 = vrot.slane %v427, 1
    %v429 = vadd.f32 %v427, %v428
    %v430 = vadd.f32 %v417, %v418
    %v431 = vadd.f32 %v430, %v419
    %v432 = vadd.f32 %v431, %v420
    %v433 = vrot.slane %v432, 4
    %v434 = vadd.f32 %v432, %v433
    %v435 = vrot.slane %v434, 2
    %v436 = vadd.f32 %v434, %v435
    %v437 = vrot.slane %v436, 1
    %v438 = vadd.f32 %v436, %v437
    %vm441 = vcmask 1041409
    %v442 = vsel %vm441, %v438, %v429
    %444 = vst [vmem:[#allocation2] sm:$0x3] %v442
    // Predicated region
    $region18: #{tpu_custom_call.1} parent=1 // pred_check
      _
    $region19: #{tpu_custom_call.1} parent=1 // pred_check_branch
      %446 = sbr.rel (0) target = $region21
    $region20: #{tpu_custom_call.1} parent=1 // pred_region
      %s448 = ssub.s32 32, 32
      %449 = vsyncadd [#allocation3], %s448
      %s451 = sshll.u32 [#allocation2], 4
      %s452 = int_to_ptr.vmem [resolvable:$true] %s451
      %454 = dma.vmem_to_hbm [thread:$0]  %s452, 32, %s4, [#allocation3]
    $region21: #{tpu_custom_call.1} parent=1 // pred_fallthru
      _
    // Predicated region
    $region22: #{tpu_custom_call.1} parent=1 // pred_check
      _
    $region23: #{tpu_custom_call.1} parent=1 // pred_check_branch
      %456 = sbr.rel (0) target = $region25
    $region24: #{tpu_custom_call.1} parent=1 // pred_region
      %457 = dma.done [#allocation3], 32
    $region25: #{tpu_custom_call.1} parent=1 // pred_fallthru
      _
    %458 = vsyncpa [#allocation3], 1

</llo_original>
